<compile_context>
chip_gen: v6e
topology: v6e:2x2x1
jax: 0.10.0
libtpu: 0.0.40
codegen_flags: <defaults>
</compile_context>

<pallas_src>
import functools

import jax
import jax.numpy as jnp
from jax.experimental import pallas as pl
from jax.experimental.pallas import tpu as pltpu


LANE = 128


def _round_up(n, m):
    return ((n + m - 1) // m) * m


def _pad2d(x, rows, cols, dtype):
    out = jnp.zeros((rows, cols), dtype)
    return out.at[: x.shape[0], : x.shape[1]].set(x.astype(dtype))


def critic_kernel(s_ref, a_ref, w1s_ref, w1a_ref, b1_ref,
                  w2_ref, b2_ref, w3_ref, b3_ref, o_ref):
    """Fused fc1(concat) -> relu -> fc2 -> relu -> q1, all resident in VMEM."""
    s = s_ref[...].astype(jnp.bfloat16)
    a = a_ref[...].astype(jnp.bfloat16)

    # fc1 on concat([state, action]) == s @ W1_s + a @ W1_a  (split matmul)
    h1 = (jnp.dot(s, w1s_ref[...], preferred_element_type=jnp.float32)
          + jnp.dot(a, w1a_ref[...], preferred_element_type=jnp.float32)
          + b1_ref[...])
    h1 = jnp.maximum(h1, 0.0)

    # fc2 + ReLU
    h2 = jnp.dot(h1.astype(jnp.bfloat16), w2_ref[...],
                 preferred_element_type=jnp.float32) + b2_ref[...]
    h2 = jnp.maximum(h2, 0.0)

    # q1 (lane-dense padded output; real Q value lives in column 0)
    q = jnp.dot(h2.astype(jnp.bfloat16), w3_ref[...],
                preferred_element_type=jnp.float32) + b3_ref[...]
    o_ref[...] = q.astype(o_ref.dtype)


def prepare_critic_params(w1, b1, w2, b2, w3, b3, input_dims, n_actions):
    """Split fc1 weight into state/action halves, zero-pad everything to 128,
    and cast weights to bf16 (biases stay f32). Done once at init time."""
    fc1 = w1.shape[1]
    fc2 = w2.shape[1]

    ds = _round_up(input_dims, LANE)
    da = _round_up(n_actions, LANE)
    h1 = _round_up(fc1, LANE)
    h2 = _round_up(fc2, LANE)
    dq = LANE  # q output dim 1 -> padded to one full lane register

    w1s = _pad2d(w1[:input_dims, :], ds, h1, jnp.bfloat16)
    w1a = _pad2d(w1[input_dims:, :], da, h1, jnp.bfloat16)
    b1p = _pad2d(b1, 1, h1, jnp.float32)
    w2p = _pad2d(w2, h1, h2, jnp.bfloat16)
    b2p = _pad2d(b2, 1, h2, jnp.float32)
    w3p = _pad2d(w3, h2, dq, jnp.bfloat16)
    b3p = _pad2d(b3, 1, dq, jnp.float32)
    return (w1s, w1a, b1p, w2p, b2p, w3p, b3p)


@jax.jit
def critic_forward(state, action, w1s, w1a, b1, w2, b2, w3, b3):
    batch = state.shape[0]
    ds, h1 = w1s.shape
    da = w1a.shape[0]
    dq = w3.shape[1]

    # Batch tile: 256-row tiles once the batch is large (fills v6e/v7x 256^2 MXU),
    # otherwise a single sublane-aligned tile. Weights stay resident either way.
    tb = 256 if batch >= 256 else _round_up(batch, 8)
    b_pad = _round_up(batch, tb)

    s_p = _pad2d(state, b_pad, ds, jnp.float32)
    a_p = _pad2d(action, b_pad, da, jnp.float32)

    resident = lambda shape: pl.BlockSpec(shape, lambda i: (0, 0))

    out = pl.pallas_call(
        critic_kernel,
        out_shape=jax.ShapeDtypeStruct((b_pad, dq), jnp.float32),
        grid_spec=pltpu.PrefetchScalarGridSpec(
            num_scalar_prefetch=0,
            grid=(b_pad // tb,),
            in_specs=[
                pl.BlockSpec((tb, ds), lambda i: (i, 0)),   # state tile
                pl.BlockSpec((tb, da), lambda i: (i, 0)),   # action tile
                resident(w1s.shape), resident(w1a.shape), resident(b1.shape),
                resident(w2.shape), resident(b2.shape),
                resident(w3.shape), resident(b3.shape),
            ],
            out_specs=pl.BlockSpec((tb, dq), lambda i: (i, 0)),
        ),
        compiler_params=pltpu.CompilerParams(
            dimension_semantics=("parallel",)),
    )(s_p, a_p, w1s, w1a, b1, w2, b2, w3, b3)

    # Real Q value is column 0 of the lane-dense slab; drop batch padding too.
    return out[:batch, :1]


def init_linear_params(key, fan_in, fan_out):
    """PyTorch nn.Linear default init: U(-1/sqrt(fan_in), 1/sqrt(fan_in)).
    Weight is returned transposed to (fan_in, fan_out) for x @ W."""
    k_w, k_b = jax.random.split(key)
    bound = 1.0 / jnp.sqrt(jnp.float32(fan_in))
    w = jax.random.uniform(k_w, (fan_in, fan_out), jnp.float32, -bound, bound)
    b = jax.random.uniform(k_b, (1, fan_out), jnp.float32, -bound, bound)
    return w, b


if __name__ == "__main__":
    # Small, forward-consistent shapes: input_dims=(8,), n_actions=4,
    # fc1Dms=32, fc2Dms=32, batch=2.  (Note: at batch=2 this path is entirely
    # overhead-bound; the kernel pays off once batch fills an MXU tile.)
    batch, input_dims, n_actions, fc1Dms, fc2Dms = 2, 8, 4, 32, 32

    key = jax.random.PRNGKey(0)
    k_s, k_a, k1, k2, k3 = jax.random.split(key, 5)

    state = jax.random.normal(k_s, (batch, input_dims), jnp.float32)
    action = jax.random.normal(k_a, (batch, n_actions), jnp.float32)

    w1, b1 = init_linear_params(k1, input_dims + n_actions, fc1Dms)
    w2, b2 = init_linear_params(k2, fc1Dms, fc2Dms)
    w3, b3 = init_linear_params(k3, fc2Dms, 1)

    params = prepare_critic_params(w1, b1, w2, b2, w3, b3, input_dims, n_actions)

    q = critic_forward(state, action, *params)
    jax.block_until_ready(q)

    # Pure-JAX f32 reference of the CriticNet forward.
    sa = jnp.concatenate([state, action], axis=1)
    ref = jnp.maximum(sa @ w1 + b1, 0.0)
    ref = jnp.maximum(ref @ w2 + b2, 0.0)
    ref = ref @ w3 + b3

    assert q.shape == (batch, 1)
    # bf16 matmul operands -> loosened tolerance vs the f32 reference.
    assert jnp.allclose(q, ref, atol=3e-2, rtol=3e-2), (q, ref)

    print("KERNEL_OK")
</pallas_src>

<mosaic_0001>
module attributes {stable_mosaic.version = 11 : i64} {
  func.func @critic_kernel(%arg0: i32, %arg1: memref<8x128xf32, #tpu.memory_space<vmem>>, %arg2: memref<8x128xf32, #tpu.memory_space<vmem>>, %arg3: memref<128x128xbf16, #tpu.memory_space<vmem>>, %arg4: memref<128x128xbf16, #tpu.memory_space<vmem>>, %arg5: memref<1x128xf32, #tpu.memory_space<vmem>>, %arg6: memref<128x128xbf16, #tpu.memory_space<vmem>>, %arg7: memref<1x128xf32, #tpu.memory_space<vmem>>, %arg8: memref<128x128xbf16, #tpu.memory_space<vmem>>, %arg9: memref<1x128xf32, #tpu.memory_space<vmem>>, %arg10: memref<8x128xf32, #tpu.memory_space<vmem>>) attributes {dimension_semantics = [#tpu.dimension_semantics<parallel>], iteration_bounds = array<i64: 1>, scalar_prefetch = 0 : i64, scratch_operands = 0 : i64, tpu.core_type = #tpu.core_type<tc>, window_params = [{transform_indices = @transform_0, window_bounds = array<i64: 8, 128>}, {transform_indices = @transform_1, window_bounds = array<i64: 8, 128>}, {pipeline_mode = #tpu.pipeline_mode<synchronous>, transform_indices = @transform_2, window_bounds = array<i64: 128, 128>}, {pipeline_mode = #tpu.pipeline_mode<synchronous>, transform_indices = @transform_3, window_bounds = array<i64: 128, 128>}, {pipeline_mode = #tpu.pipeline_mode<synchronous>, transform_indices = @transform_4, window_bounds = array<i64: 1, 128>}, {pipeline_mode = #tpu.pipeline_mode<synchronous>, transform_indices = @transform_5, window_bounds = array<i64: 128, 128>}, {pipeline_mode = #tpu.pipeline_mode<synchronous>, transform_indices = @transform_6, window_bounds = array<i64: 1, 128>}, {pipeline_mode = #tpu.pipeline_mode<synchronous>, transform_indices = @transform_7, window_bounds = array<i64: 128, 128>}, {pipeline_mode = #tpu.pipeline_mode<synchronous>, transform_indices = @transform_8, window_bounds = array<i64: 1, 128>}, {transform_indices = @transform_9, window_bounds = array<i64: 8, 128>}]} {
    %c0 = arith.constant 0 : index
    %c0_0 = arith.constant 0 : index
    %0 = vector.load %arg1[%c0, %c0_0] : memref<8x128xf32, #tpu.memory_space<vmem>>, vector<8x128xf32>
    %1 = arith.truncf %0 : vector<8x128xf32> to vector<8x128xbf16>
    %c0_1 = arith.constant 0 : index
    %c0_2 = arith.constant 0 : index
    %2 = vector.load %arg2[%c0_1, %c0_2] : memref<8x128xf32, #tpu.memory_space<vmem>>, vector<8x128xf32>
    %3 = arith.truncf %2 : vector<8x128xf32> to vector<8x128xbf16>
    %c0_3 = arith.constant 0 : index
    %c0_4 = arith.constant 0 : index
    %4 = vector.load %arg3[%c0_3, %c0_4] : memref<128x128xbf16, #tpu.memory_space<vmem>>, vector<128x128xbf16>
    %cst = arith.constant dense<0.000000e+00> : vector<8x128xf32>
    %5 = tpu.matmul %1, %4, %cst {dimension_numbers = #tpu.dot_dimension_numbers<[1], [0], [0], [1], [0, 0, 1, 1], [], []>} : vector<8x128xbf16>, vector<128x128xbf16>, vector<8x128xf32> -> vector<8x128xf32>
    %c0_5 = arith.constant 0 : index
    %c0_6 = arith.constant 0 : index
    %6 = vector.load %arg4[%c0_5, %c0_6] : memref<128x128xbf16, #tpu.memory_space<vmem>>, vector<128x128xbf16>
    %cst_7 = arith.constant dense<0.000000e+00> : vector<8x128xf32>
    %7 = tpu.matmul %3, %6, %cst_7 {dimension_numbers = #tpu.dot_dimension_numbers<[1], [0], [0], [1], [0, 0, 1, 1], [], []>} : vector<8x128xbf16>, vector<128x128xbf16>, vector<8x128xf32> -> vector<8x128xf32>
    %8 = arith.addf %5, %7 : vector<8x128xf32>
    %c0_8 = arith.constant 0 : index
    %c0_9 = arith.constant 0 : index
    %9 = vector.load %arg5[%c0_8, %c0_9] : memref<1x128xf32, #tpu.memory_space<vmem>>, vector<1x128xf32>
    %10 = vector.broadcast %9 : vector<1x128xf32> to vector<8x128xf32>
    %11 = arith.addf %8, %10 : vector<8x128xf32>
    %cst_10 = arith.constant 0.000000e+00 : f32
    %12 = vector.broadcast %cst_10 : f32 to vector<8x128xf32>
    %13 = arith.maximumf %11, %12 : vector<8x128xf32>
    %14 = arith.truncf %13 : vector<8x128xf32> to vector<8x128xbf16>
    %c0_11 = arith.constant 0 : index
    %c0_12 = arith.constant 0 : index
    %15 = vector.load %arg6[%c0_11, %c0_12] : memref<128x128xbf16, #tpu.memory_space<vmem>>, vector<128x128xbf16>
    %cst_13 = arith.constant dense<0.000000e+00> : vector<8x128xf32>
    %16 = tpu.matmul %14, %15, %cst_13 {dimension_numbers = #tpu.dot_dimension_numbers<[1], [0], [0], [1], [0, 0, 1, 1], [], []>} : vector<8x128xbf16>, vector<128x128xbf16>, vector<8x128xf32> -> vector<8x128xf32>
    %c0_14 = arith.constant 0 : index
    %c0_15 = arith.constant 0 : index
    %17 = vector.load %arg7[%c0_14, %c0_15] : memref<1x128xf32, #tpu.memory_space<vmem>>, vector<1x128xf32>
    %18 = vector.broadcast %17 : vector<1x128xf32> to vector<8x128xf32>
    %19 = arith.addf %16, %18 : vector<8x128xf32>
    %cst_16 = arith.constant 0.000000e+00 : f32
    %20 = vector.broadcast %cst_16 : f32 to vector<8x128xf32>
    %21 = arith.maximumf %19, %20 : vector<8x128xf32>
    %22 = arith.truncf %21 : vector<8x128xf32> to vector<8x128xbf16>
    %c0_17 = arith.constant 0 : index
    %c0_18 = arith.constant 0 : index
    %23 = vector.load %arg8[%c0_17, %c0_18] : memref<128x128xbf16, #tpu.memory_space<vmem>>, vector<128x128xbf16>
    %cst_19 = arith.constant dense<0.000000e+00> : vector<8x128xf32>
    %24 = tpu.matmul %22, %23, %cst_19 {dimension_numbers = #tpu.dot_dimension_numbers<[1], [0], [0], [1], [0, 0, 1, 1], [], []>} : vector<8x128xbf16>, vector<128x128xbf16>, vector<8x128xf32> -> vector<8x128xf32>
    %c0_20 = arith.constant 0 : index
    %c0_21 = arith.constant 0 : index
    %25 = vector.load %arg9[%c0_20, %c0_21] : memref<1x128xf32, #tpu.memory_space<vmem>>, vector<1x128xf32>
    %26 = vector.broadcast %25 : vector<1x128xf32> to vector<8x128xf32>
    %27 = arith.addf %24, %26 : vector<8x128xf32>
    %c0_22 = arith.constant 0 : index
    %c0_23 = arith.constant 0 : index
    %28 = vector.load %arg10[%c0_22, %c0_23] : memref<8x128xf32, #tpu.memory_space<vmem>>, vector<8x128xf32>
    tpu.vector_store %arg10[%c0_22, %c0_23], %27 {strides = array<i32>} : memref<8x128xf32, #tpu.memory_space<vmem>>, vector<8x128xf32>,
    return
  }
  func.func @transform_0(%arg0: i32) -> (i32, i32) {
    %c0_i32 = arith.constant 0 : i32
    %c0_i32_0 = arith.constant 0 : i32
    return %arg0, %c0_i32 : i32, i32
  }
  func.func @transform_1(%arg0: i32) -> (i32, i32) {
    %c0_i32 = arith.constant 0 : i32
    %c0_i32_0 = arith.constant 0 : i32
    return %arg0, %c0_i32 : i32, i32
  }
  func.func @transform_2(%arg0: i32) -> (i32, i32) {
    %c0_i32 = arith.constant 0 : i32
    %c0_i32_0 = arith.constant 0 : i32
    %c0_i32_1 = arith.constant 0 : i32
    return %c0_i32, %c0_i32_0 : i32, i32
  }
  func.func @transform_3(%arg0: i32) -> (i32, i32) {
    %c0_i32 = arith.constant 0 : i32
    %c0_i32_0 = arith.constant 0 : i32
    %c0_i32_1 = arith.constant 0 : i32
    return %c0_i32, %c0_i32_0 : i32, i32
  }
  func.func @transform_4(%arg0: i32) -> (i32, i32) {
    %c0_i32 = arith.constant 0 : i32
    %c0_i32_0 = arith.constant 0 : i32
    %c0_i32_1 = arith.constant 0 : i32
    return %c0_i32, %c0_i32_0 : i32, i32
  }
  func.func @transform_5(%arg0: i32) -> (i32, i32) {
    %c0_i32 = arith.constant 0 : i32
    %c0_i32_0 = arith.constant 0 : i32
    %c0_i32_1 = arith.constant 0 : i32
    return %c0_i32, %c0_i32_0 : i32, i32
  }
  func.func @transform_6(%arg0: i32) -> (i32, i32) {
    %c0_i32 = arith.constant 0 : i32
    %c0_i32_0 = arith.constant 0 : i32
    %c0_i32_1 = arith.constant 0 : i32
    return %c0_i32, %c0_i32_0 : i32, i32
  }
  func.func @transform_7(%arg0: i32) -> (i32, i32) {
    %c0_i32 = arith.constant 0 : i32
    %c0_i32_0 = arith.constant 0 : i32
    %c0_i32_1 = arith.constant 0 : i32
    return %c0_i32, %c0_i32_0 : i32, i32
  }
  func.func @transform_8(%arg0: i32) -> (i32, i32) {
    %c0_i32 = arith.constant 0 : i32
    %c0_i32_0 = arith.constant 0 : i32
    %c0_i32_1 = arith.constant 0 : i32
    return %c0_i32, %c0_i32_0 : i32, i32
  }
  func.func @transform_9(%arg0: i32) -> (i32, i32) {
    %c0_i32 = arith.constant 0 : i32
    %c0_i32_0 = arith.constant 0 : i32
    return %arg0, %c0_i32 : i32, i32
  }
}

</mosaic_0001>

<llo_original>
// kernel: critic_forward.1
$region0: #{critic_forward.1}
  #allocation0 [shape = 'u32[]', space=smem, size = 0x4, offset = 0x4, fixed_abs, tag = 'smem constant byte address 0x4 - core index']
  #allocation1 [shape = 'u32[144,128]{1,0:T(1,128)}', space=vmem, size = 0x12000, scoped, tag = 'internal scratch']
  %s0 = inlined_call_operand.vmem [shape: f32[8,128], index: 0, kind: input, shape index: {}]
  %s1 = inlined_call_operand.vmem [shape: f32[8,128], index: 1, kind: input, shape index: {}]
  %s2 = inlined_call_operand.hbm [shape: bf16[128,128], index: 2, kind: input, shape index: {}]
  %s3 = inlined_call_operand.hbm [shape: bf16[128,128], index: 3, kind: input, shape index: {}]
  %s4 = inlined_call_operand.vmem [shape: f32[1,128], index: 4, kind: input, shape index: {}]
  %s5 = inlined_call_operand.hbm [shape: bf16[128,128], index: 5, kind: input, shape index: {}]
  %s6 = inlined_call_operand.vmem [shape: f32[1,128], index: 6, kind: input, shape index: {}]
  %s7 = inlined_call_operand.hbm [shape: bf16[128,128], index: 7, kind: input, shape index: {}]
  %s8 = inlined_call_operand.vmem [shape: f32[1,128], index: 8, kind: input, shape index: {}]
  %s9 = inlined_call_operand.vmem [shape: f32[8,128], index: 9, kind: output, shape index: {}]
  %s10 = sld [smem:[#allocation0]]
  $region62: #{critic_forward.1} parent=0
    _
  %s12 = ssub.s32 1, %s10
  %s13 = scalar_select 0, %s12, %s10
  $region1: #{critic_forward.1} parent=0
    #allocation2 [shape = 'u8[32768]{0}', space=vmem, size = 0x8000, scoped, tag = 'input window, operand 2, single buffered']
    #allocation3 [shape = 's32[1]{0}', space=sflag, size = 0x4, scoped, tag = 'scoped memory for critic_forward.1']
    #allocation4 [shape = 'u8[32768]{0}', space=vmem, size = 0x8000, scoped, tag = 'input window, operand 3, single buffered']
    #allocation5 [shape = 's32[1]{0}', space=sflag, size = 0x4, scoped, tag = 'scoped memory for critic_forward.1']
    #allocation6 [shape = 'u8[32768]{0}', space=vmem, size = 0x8000, scoped, tag = 'input window, operand 5, single buffered']
    #allocation7 [shape = 'u8[32768]{0}', space=vmem, size = 0x8000, scoped, tag = 'input window, operand 7, single buffered']
    #allocation8 [shape = 's32[1]{0}', space=sflag, size = 0x4, scoped, tag = 'scoped memory for critic_forward.1']
    %14 = vsyncpa [#allocation3], 0
    %15 = vsyncpa [#allocation5], 0
    %16 = vsyncpa [#allocation8], 0
    // Predicated region
    $region2: #{critic_forward.1} parent=1 // pred_check
      _
    $region3: #{critic_forward.1} parent=1 // pred_check_branch
      %18 = sbr.rel (0) target = $region5
    $region4: #{critic_forward.1} parent=1 // pred_region
      _
    $region5: #{critic_forward.1} parent=1 // pred_fallthru
      _
    // Predicated region
    $region6: #{critic_forward.1} parent=1 // pred_check
      _
    $region7: #{critic_forward.1} parent=1 // pred_check_branch
      %20 = sbr.rel (0) target = $region9
    $region8: #{critic_forward.1} parent=1 // pred_region
      _
    $region9: #{critic_forward.1} parent=1 // pred_fallthru
      _
    // Predicated region
    $region10: #{critic_forward.1} parent=1 // pred_check
      _
    $region11: #{critic_forward.1} parent=1 // pred_check_branch
      %22 = sbr.rel (0) target = $region13
    $region12: #{critic_forward.1} parent=1 // pred_region
      %s24 = ssub.s32 1024, 1024
      %25 = vsyncadd [#allocation3], %s24
      %s26 = sshll.u32 [#allocation2], 4
      %s27 = int_to_ptr.vmem [resolvable:$true] %s26
      %32 = dma.hbm_to_vmem [thread:$0]  %s2, 1024, %s27, [#allocation3], 64, 64, 4
    $region13: #{critic_forward.1} parent=1 // pred_fallthru
      _
    // Predicated region
    $region14: #{critic_forward.1} parent=1 // pred_check
      _
    $region15: #{critic_forward.1} parent=1 // pred_check_branch
      %34 = sbr.rel (0) target = $region17
    $region16: #{critic_forward.1} parent=1 // pred_region
      %s36 = ssub.s32 1024, 1024
      %37 = vsyncadd [#allocation5], %s36
      %s38 = sshll.u32 [#allocation4], 4
      %s39 = int_to_ptr.vmem [resolvable:$true] %s38
      %44 = dma.hbm_to_vmem [thread:$0]  %s3, 1024, %s39, [#allocation5], 64, 64, 4
    $region17: #{critic_forward.1} parent=1 // pred_fallthru
      _
    // Predicated region
    $region18: #{critic_forward.1} parent=1 // pred_check
      _
    $region19: #{critic_forward.1} parent=1 // pred_check_branch
      %46 = sbr.rel (0) target = $region21
    $region20: #{critic_forward.1} parent=1 // pred_region
      _
    $region21: #{critic_forward.1} parent=1 // pred_fallthru
      _
    // Predicated region
    $region22: #{critic_forward.1} parent=1 // pred_check
      _
    $region23: #{critic_forward.1} parent=1 // pred_check_branch
      %48 = sbr.rel (0) target = $region25
    $region24: #{critic_forward.1} parent=1 // pred_region
      %s50 = ssub.s32 1024, 1024
      %51 = vsyncadd [#allocation5], %s50
      %s52 = sshll.u32 [#allocation6], 4
      %s53 = int_to_ptr.vmem [resolvable:$true] %s52
      %58 = dma.hbm_to_vmem [thread:$0]  %s5, 1024, %s53, [#allocation5], 64, 64, 4
    $region25: #{critic_forward.1} parent=1 // pred_fallthru
      _
    // Predicated region
    $region26: #{critic_forward.1} parent=1 // pred_check
      _
    $region27: #{critic_forward.1} parent=1 // pred_check_branch
      %60 = sbr.rel (0) target = $region29
    $region28: #{critic_forward.1} parent=1 // pred_region
      _
    $region29: #{critic_forward.1} parent=1 // pred_fallthru
      _
    // Predicated region
    $region30: #{critic_forward.1} parent=1 // pred_check
      _
    $region31: #{critic_forward.1} parent=1 // pred_check_branch
      %62 = sbr.rel (0) target = $region33
    $region32: #{critic_forward.1} parent=1 // pred_region
      %s64 = ssub.s32 1024, 1024
      %65 = vsyncadd [#allocation8], %s64
      %s66 = sshll.u32 [#allocation7], 4
      %s67 = int_to_ptr.vmem [resolvable:$true] %s66
      %72 = dma.hbm_to_vmem [thread:$0]  %s7, 1024, %s67, [#allocation8], 64, 64, 4
    $region33: #{critic_forward.1} parent=1 // pred_fallthru
      _
    // Predicated region
    $region34: #{critic_forward.1} parent=1 // pred_check
      _
    $region35: #{critic_forward.1} parent=1 // pred_check_branch
      %74 = sbr.rel (0) target = $region37
    $region36: #{critic_forward.1} parent=1 // pred_region
      _
    $region37: #{critic_forward.1} parent=1 // pred_fallthru
      _
    // Predicated region
    $region38: #{critic_forward.1} parent=1 // pred_check
      _
    $region39: #{critic_forward.1} parent=1 // pred_check_branch
      %76 = sbr.rel (0) target = $region41
    $region40: #{critic_forward.1} parent=1 // pred_region
      %77 = dma.done [#allocation3], 1024
    $region41: #{critic_forward.1} parent=1 // pred_fallthru
      _
    // Predicated region
    $region42: #{critic_forward.1} parent=1 // pred_check
      _
    $region43: #{critic_forward.1} parent=1 // pred_check_branch
      %79 = sbr.rel (0) target = $region45
    $region44: #{critic_forward.1} parent=1 // pred_region
      %80 = dma.done [#allocation5], 1024
    $region45: #{critic_forward.1} parent=1 // pred_fallthru
      _
    // Predicated region
    $region46: #{critic_forward.1} parent=1 // pred_check
      _
    $region47: #{critic_forward.1} parent=1 // pred_check_branch
      %82 = sbr.rel (0) target = $region49
    $region48: #{critic_forward.1} parent=1 // pred_region
      %83 = dma.done [#allocation5], 1024
    $region49: #{critic_forward.1} parent=1 // pred_fallthru
      _
    // Predicated region
    $region50: #{critic_forward.1} parent=1 // pred_check
      _
    $region51: #{critic_forward.1} parent=1 // pred_check_branch
      %85 = sbr.rel (0) target = $region53
    $region52: #{critic_forward.1} parent=1 // pred_region
      %86 = dma.done [#allocation8], 1024
    $region53: #{critic_forward.1} parent=1 // pred_fallthru
      _
    %v88 = vld [vmem:[%s0] sm:$0xff]
    %v89 = vpack.c.bf16 %v88, %v88
    %v90 = vld [vmem:[%s1] sm:$0xff]
    %v91 = vpack.c.bf16 %v90, %v90
    %v92 = vld [vmem:[#allocation2] sm:$0xf]
    %v93 = vld [vmem:[#allocation2 + $0x4] sm:$0xf]
    %v94 = vld [vmem:[#allocation2 + $0x8] sm:$0xf]
    %v95 = vld [vmem:[#allocation2 + $0xc] sm:$0xf]
    %v96 = vld [vmem:[#allocation2 + $0x10] sm:$0xf]
    %v97 = vld [vmem:[#allocation2 + $0x14] sm:$0xf]
    %v98 = vld [vmem:[#allocation2 + $0x18] sm:$0xf]
    %v99 = vld [vmem:[#allocation2 + $0x1c] sm:$0xf]
    %v100 = vld [vmem:[#allocation2 + $0x20] sm:$0xf]
    %v101 = vld [vmem:[#allocation2 + $0x24] sm:$0xf]
    %v102 = vld [vmem:[#allocation2 + $0x28] sm:$0xf]
    %v103 = vld [vmem:[#allocation2 + $0x2c] sm:$0xf]
    %v104 = vld [vmem:[#allocation2 + $0x30] sm:$0xf]
    %v105 = vld [vmem:[#allocation2 + $0x34] sm:$0xf]
    %v106 = vld [vmem:[#allocation2 + $0x38] sm:$0xf]
    %v107 = vld [vmem:[#allocation2 + $0x3c] sm:$0xf]
    %v108 = vld [vmem:[#allocation4] sm:$0xf]
    %v109 = vld [vmem:[#allocation4 + $0x4] sm:$0xf]
    %v110 = vld [vmem:[#allocation4 + $0x8] sm:$0xf]
    %v111 = vld [vmem:[#allocation4 + $0xc] sm:$0xf]
    %v112 = vld [vmem:[#allocation4 + $0x10] sm:$0xf]
    %v113 = vld [vmem:[#allocation4 + $0x14] sm:$0xf]
    %v114 = vld [vmem:[#allocation4 + $0x18] sm:$0xf]
    %v115 = vld [vmem:[#allocation4 + $0x1c] sm:$0xf]
    %v116 = vld [vmem:[#allocation4 + $0x20] sm:$0xf]
    %v117 = vld [vmem:[#allocation4 + $0x24] sm:$0xf]
    %v118 = vld [vmem:[#allocation4 + $0x28] sm:$0xf]
    %v119 = vld [vmem:[#allocation4 + $0x2c] sm:$0xf]
    %v120 = vld [vmem:[#allocation4 + $0x30] sm:$0xf]
    %v121 = vld [vmem:[#allocation4 + $0x34] sm:$0xf]
    %v122 = vld [vmem:[#allocation4 + $0x38] sm:$0xf]
    %v123 = vld [vmem:[#allocation4 + $0x3c] sm:$0xf]
    %v140 = vunpack.c.l.b16 %v108
    %v141 = vunpack.c.l.b16 %v109
    %v142 = vunpack.c.l.b16 %v110
    %v143 = vunpack.c.l.b16 %v111
    %v144 = vunpack.c.l.b16 %v112
    %v145 = vunpack.c.l.b16 %v113
    %v146 = vunpack.c.l.b16 %v114
    %v147 = vunpack.c.l.b16 %v115
    %v148 = vunpack.c.l.b16 %v116
    %v149 = vunpack.c.l.b16 %v117
    %v150 = vunpack.c.l.b16 %v118
    %v151 = vunpack.c.l.b16 %v119
    %v152 = vunpack.c.l.b16 %v120
    %v153 = vunpack.c.l.b16 %v121
    %v154 = vunpack.c.l.b16 %v122
    %v155 = vunpack.c.l.b16 %v123
    %v156 = vpack.c.b16 %v141, %v140
    %v157 = vpack.c.b16 %v143, %v142
    %v158 = vpack.c.b16 %v145, %v144
    %v159 = vpack.c.b16 %v147, %v146
    %v160 = vpack.c.b16 %v149, %v148
    %v161 = vpack.c.b16 %v151, %v150
    %v162 = vpack.c.b16 %v153, %v152
    %v163 = vpack.c.b16 %v155, %v154
    %172 = vmatprep.subr.bf16.mxu0 0
    %173 = vmatpush1.bf16.msra.mxu0 %v163
    %174 = vmatprep.subr.bf16.mxu0 0
    %175 = vmatpush1.bf16.msra.mxu0 %v162
    %176 = vmatprep.subr.bf16.mxu0 0
    %177 = vmatpush1.bf16.msra.mxu0 %v161
    %178 = vmatprep.subr.bf16.mxu0 0
    %179 = vmatpush1.bf16.msra.mxu0 %v160
    %180 = vmatprep.subr.bf16.mxu0 0
    %181 = vmatpush1.bf16.msra.mxu0 %v159
    %182 = vmatprep.subr.bf16.mxu0 0
    %183 = vmatpush1.bf16.msra.mxu0 %v158
    %184 = vmatprep.subr.bf16.mxu0 0
    %185 = vmatpush1.bf16.msra.mxu0 %v157
    %186 = vmatprep.subr.bf16.mxu0 0
    %187 = vmatpush1.bf16.msra.mxu0 %v156
    %188 = vmatprep.subr.bf16.mxu0 0
    %189 = vmatpush2.bf16.msra.mxu0 0
    %190 = vmatprep.subr.bf16.mxu0 0
    %191 = vmatpush2.bf16.msra.mxu0 0
    %192 = vmatprep.subr.bf16.mxu0 0
    %193 = vmatpush2.bf16.msra.mxu0 0
    %194 = vmatprep.subr.bf16.mxu0 0
    %195 = vmatpush2.bf16.msra.mxu0 0
    %196 = vmatprep.subr.bf16.mxu0 0
    %197 = vmatpush2.bf16.msra.mxu0 0
    %198 = vmatprep.subr.bf16.mxu0 0
    %199 = vmatpush2.bf16.msra.mxu0 0
    %200 = vmatprep.subr.bf16.mxu0 0
    %201 = vmatpush2.bf16.msra.mxu0 0
    %202 = vmatprep.subr.bf16.mxu0 0
    %203 = vmatpush2.bf16.msra.mxu0 0
    %204 = vmatprep.mubr.bf16.mxu0 0
    %205 = vmatmul.mubr.bf16.gmra.mxu0 %v91
    %v206 = vpop.f32.mrf.mxu0
    %v207 = vadd.f32 0.0, %v206
    %v208 = vpop.f32.mrf.mxu0
    %v209 = vpop.f32.mrf.mxu0
    %v210 = vpop.f32.mrf.mxu0
    %211 = vdwg.mxu0
    %v228 = vunpack.c.l.b16 %v92
    %v229 = vunpack.c.l.b16 %v93
    %v230 = vunpack.c.l.b16 %v94
    %v231 = vunpack.c.l.b16 %v95
    %v232 = vunpack.c.l.b16 %v96
    %v233 = vunpack.c.l.b16 %v97
    %v234 = vunpack.c.l.b16 %v98
    %v235 = vunpack.c.l.b16 %v99
    %v236 = vunpack.c.l.b16 %v100
    %v237 = vunpack.c.l.b16 %v101
    %v238 = vunpack.c.l.b16 %v102
    %v239 = vunpack.c.l.b16 %v103
    %v240 = vunpack.c.l.b16 %v104
    %v241 = vunpack.c.l.b16 %v105
    %v242 = vunpack.c.l.b16 %v106
    %v243 = vunpack.c.l.b16 %v107
    %v244 = vpack.c.b16 %v229, %v228
    %v245 = vpack.c.b16 %v231, %v230
    %v246 = vpack.c.b16 %v233, %v232
    %v247 = vpack.c.b16 %v235, %v234
    %v248 = vpack.c.b16 %v237, %v236
    %v249 = vpack.c.b16 %v239, %v238
    %v250 = vpack.c.b16 %v241, %v240
    %v251 = vpack.c.b16 %v243, %v242
    %260 = vmatprep.subr.bf16.mxu0 0
    %261 = vmatpush1.bf16.msra.mxu0 %v251
    %262 = vmatprep.subr.bf16.mxu0 0
    %263 = vmatpush1.bf16.msra.mxu0 %v250
    %264 = vmatprep.subr.bf16.mxu0 0
    %265 = vmatpush1.bf16.msra.mxu0 %v249
    %266 = vmatprep.subr.bf16.mxu0 0
    %267 = vmatpush1.bf16.msra.mxu0 %v248
    %268 = vmatprep.subr.bf16.mxu0 0
    %269 = vmatpush1.bf16.msra.mxu0 %v247
    %270 = vmatprep.subr.bf16.mxu0 0
    %271 = vmatpush1.bf16.msra.mxu0 %v246
    %272 = vmatprep.subr.bf16.mxu0 0
    %273 = vmatpush1.bf16.msra.mxu0 %v245
    %274 = vmatprep.subr.bf16.mxu0 0
    %275 = vmatpush1.bf16.msra.mxu0 %v244
    %276 = vmatprep.subr.bf16.mxu0 0
    %277 = vmatpush2.bf16.msra.mxu0 0
    %278 = vmatprep.subr.bf16.mxu0 0
    %279 = vmatpush2.bf16.msra.mxu0 0
    %280 = vmatprep.subr.bf16.mxu0 0
    %281 = vmatpush2.bf16.msra.mxu0 0
    %282 = vmatprep.subr.bf16.mxu0 0
    %283 = vmatpush2.bf16.msra.mxu0 0
    %284 = vmatprep.subr.bf16.mxu0 0
    %285 = vmatpush2.bf16.msra.mxu0 0
    %286 = vmatprep.subr.bf16.mxu0 0
    %287 = vmatpush2.bf16.msra.mxu0 0
    %288 = vmatprep.subr.bf16.mxu0 0
    %289 = vmatpush2.bf16.msra.mxu0 0
    %290 = vmatprep.subr.bf16.mxu0 0
    %291 = vmatpush2.bf16.msra.mxu0 0
    %292 = vmatprep.mubr.bf16.mxu0 0
    %293 = vmatmul.mubr.bf16.gmra.mxu0 %v89
    %v294 = vpop.f32.mrf.mxu0
    %v295 = vadd.f32 %v207, %v294
    %v296 = vpop.f32.mrf.mxu0
    %v297 = vpop.f32.mrf.mxu0
    %v298 = vpop.f32.mrf.mxu0
    %299 = vdwg.mxu0
    %v300 = vld [vmem:[%s4] sm:$0x1]
    %v302 = vlaneseq
    %v303 = vshrl.u32 %v302, 7
    %v304 = vsub.s32 0, %v303
    %v305 = vrot.slane %v300, %v304
    %v307 = vadd.f32 %v295, %v305
    %v308 = vmax.f32 %v307, 0.0
    %v309 = vpack.c.bf16 %v308, %v308
    %v310 = vld [vmem:[#allocation6] sm:$0xf]
    %v311 = vld [vmem:[#allocation6 + $0x4] sm:$0xf]
    %v312 = vld [vmem:[#allocation6 + $0x8] sm:$0xf]
    %v313 = vld [vmem:[#allocation6 + $0xc] sm:$0xf]
    %v314 = vld [vmem:[#allocation6 + $0x10] sm:$0xf]
    %v315 = vld [vmem:[#allocation6 + $0x14] sm:$0xf]
    %v316 = vld [vmem:[#allocation6 + $0x18] sm:$0xf]
    %v317 = vld [vmem:[#allocation6 + $0x1c] sm:$0xf]
    %v318 = vld [vmem:[#allocation6 + $0x20] sm:$0xf]
    %v319 = vld [vmem:[#allocation6 + $0x24] sm:$0xf]
    %v320 = vld [vmem:[#allocation6 + $0x28] sm:$0xf]
    %v321 = vld [vmem:[#allocation6 + $0x2c] sm:$0xf]
    %v322 = vld [vmem:[#allocation6 + $0x30] sm:$0xf]
    %v323 = vld [vmem:[#allocation6 + $0x34] sm:$0xf]
    %v324 = vld [vmem:[#allocation6 + $0x38] sm:$0xf]
    %v325 = vld [vmem:[#allocation6 + $0x3c] sm:$0xf]
    %v326 = vld [vmem:[%s6] sm:$0x1]
    %v328 = vlaneseq
    %v329 = vshrl.u32 %v328, 7
    %v330 = vsub.s32 0, %v329
    %v331 = vrot.slane %v326, %v330
    %v349 = vunpack.c.l.b16 %v310
    %v350 = vunpack.c.l.b16 %v311
    %v351 = vunpack.c.l.b16 %v312
    %v352 = vunpack.c.l.b16 %v313
    %v353 = vunpack.c.l.b16 %v314
    %v354 = vunpack.c.l.b16 %v315
    %v355 = vunpack.c.l.b16 %v316
    %v356 = vunpack.c.l.b16 %v317
    %v357 = vunpack.c.l.b16 %v318
    %v358 = vunpack.c.l.b16 %v319
    %v359 = vunpack.c.l.b16 %v320
    %v360 = vunpack.c.l.b16 %v321
    %v361 = vunpack.c.l.b16 %v322
    %v362 = vunpack.c.l.b16 %v323
    %v363 = vunpack.c.l.b16 %v324
    %v364 = vunpack.c.l.b16 %v325
    %v365 = vpack.c.b16 %v350, %v349
    %v366 = vpack.c.b16 %v352, %v351
    %v367 = vpack.c.b16 %v354, %v353
    %v368 = vpack.c.b16 %v356, %v355
    %v369 = vpack.c.b16 %v358, %v357
    %v370 = vpack.c.b16 %v360, %v359
    %v371 = vpack.c.b16 %v362, %v361
    %v372 = vpack.c.b16 %v364, %v363
    %381 = vmatprep.subr.bf16.mxu0 0
    %382 = vmatpush1.bf16.msra.mxu0 %v372
    %383 = vmatprep.subr.bf16.mxu0 0
    %384 = vmatpush1.bf16.msra.mxu0 %v371
    %385 = vmatprep.subr.bf16.mxu0 0
    %386 = vmatpush1.bf16.msra.mxu0 %v370
    %387 = vmatprep.subr.bf16.mxu0 0
    %388 = vmatpush1.bf16.msra.mxu0 %v369
    %389 = vmatprep.subr.bf16.mxu0 0
    %390 = vmatpush1.bf16.msra.mxu0 %v368
    %391 = vmatprep.subr.bf16.mxu0 0
    %392 = vmatpush1.bf16.msra.mxu0 %v367
    %393 = vmatprep.subr.bf16.mxu0 0
    %394 = vmatpush1.bf16.msra.mxu0 %v366
    %395 = vmatprep.subr.bf16.mxu0 0
    %396 = vmatpush1.bf16.msra.mxu0 %v365
    %397 = vmatprep.subr.bf16.mxu0 0
    %398 = vmatpush2.bf16.msra.mxu0 0
    %399 = vmatprep.subr.bf16.mxu0 0
    %400 = vmatpush2.bf16.msra.mxu0 0
    %401 = vmatprep.subr.bf16.mxu0 0
    %402 = vmatpush2.bf16.msra.mxu0 0
    %403 = vmatprep.subr.bf16.mxu0 0
    %404 = vmatpush2.bf16.msra.mxu0 0
    %405 = vmatprep.subr.bf16.mxu0 0
    %406 = vmatpush2.bf16.msra.mxu0 0
    %407 = vmatprep.subr.bf16.mxu0 0
    %408 = vmatpush2.bf16.msra.mxu0 0
    %409 = vmatprep.subr.bf16.mxu0 0
    %410 = vmatpush2.bf16.msra.mxu0 0
    %411 = vmatprep.subr.bf16.mxu0 0
    %412 = vmatpush2.bf16.msra.mxu0 0
    %413 = vmatprep.mubr.bf16.mxu0 0
    %414 = vmatmul.mubr.bf16.gmra.mxu0 %v309
    %v415 = vpop.f32.mrf.mxu0
    %v416 = vadd.f32 %v331, %v415
    %v417 = vpop.f32.mrf.mxu0
    %v418 = vpop.f32.mrf.mxu0
    %v419 = vpop.f32.mrf.mxu0
    %420 = vdwg.mxu0
    %v421 = vmax.f32 %v416, 0.0
    %v422 = vpack.c.bf16 %v421, %v421
    %v423 = vld [vmem:[#allocation7] sm:$0xf]
    %v424 = vld [vmem:[#allocation7 + $0x4] sm:$0xf]
    %v425 = vld [vmem:[#allocation7 + $0x8] sm:$0xf]
    %v426 = vld [vmem:[#allocation7 + $0xc] sm:$0xf]
    %v427 = vld [vmem:[#allocation7 + $0x10] sm:$0xf]
    %v428 = vld [vmem:[#allocation7 + $0x14] sm:$0xf]
    %v429 = vld [vmem:[#allocation7 + $0x18] sm:$0xf]
    %v430 = vld [vmem:[#allocation7 + $0x1c] sm:$0xf]
    %v431 = vld [vmem:[#allocation7 + $0x20] sm:$0xf]
    %v432 = vld [vmem:[#allocation7 + $0x24] sm:$0xf]
    %v433 = vld [vmem:[#allocation7 + $0x28] sm:$0xf]
    %v434 = vld [vmem:[#allocation7 + $0x2c] sm:$0xf]
    %v435 = vld [vmem:[#allocation7 + $0x30] sm:$0xf]
    %v436 = vld [vmem:[#allocation7 + $0x34] sm:$0xf]
    %v437 = vld [vmem:[#allocation7 + $0x38] sm:$0xf]
    %v438 = vld [vmem:[#allocation7 + $0x3c] sm:$0xf]
    %v439 = vld [vmem:[%s8] sm:$0x1]
    %v441 = vlaneseq
    %v442 = vshrl.u32 %v441, 7
    %v443 = vsub.s32 0, %v442
    %v444 = vrot.slane %v439, %v443
    %v462 = vunpack.c.l.b16 %v423
    %v463 = vunpack.c.l.b16 %v424
    %v464 = vunpack.c.l.b16 %v425
    %v465 = vunpack.c.l.b16 %v426
    %v466 = vunpack.c.l.b16 %v427
    %v467 = vunpack.c.l.b16 %v428
    %v468 = vunpack.c.l.b16 %v429
    %v469 = vunpack.c.l.b16 %v430
    %v470 = vunpack.c.l.b16 %v431
    %v471 = vunpack.c.l.b16 %v432
    %v472 = vunpack.c.l.b16 %v433
    %v473 = vunpack.c.l.b16 %v434
    %v474 = vunpack.c.l.b16 %v435
    %v475 = vunpack.c.l.b16 %v436
    %v476 = vunpack.c.l.b16 %v437
    %v477 = vunpack.c.l.b16 %v438
    %v478 = vpack.c.b16 %v463, %v462
    %v479 = vpack.c.b16 %v465, %v464
    %v480 = vpack.c.b16 %v467, %v466
    %v481 = vpack.c.b16 %v469, %v468
    %v482 = vpack.c.b16 %v471, %v470
    %v483 = vpack.c.b16 %v473, %v472
    %v484 = vpack.c.b16 %v475, %v474
    %v485 = vpack.c.b16 %v477, %v476
    %494 = vmatprep.subr.bf16.mxu0 0
    %495 = vmatpush1.bf16.msra.mxu0 %v485
    %496 = vmatprep.subr.bf16.mxu0 0
    %497 = vmatpush1.bf16.msra.mxu0 %v484
    %498 = vmatprep.subr.bf16.mxu0 0
    %499 = vmatpush1.bf16.msra.mxu0 %v483
    %500 = vmatprep.subr.bf16.mxu0 0
    %501 = vmatpush1.bf16.msra.mxu0 %v482
    %502 = vmatprep.subr.bf16.mxu0 0
    %503 = vmatpush1.bf16.msra.mxu0 %v481
    %504 = vmatprep.subr.bf16.mxu0 0
    %505 = vmatpush1.bf16.msra.mxu0 %v480
    %506 = vmatprep.subr.bf16.mxu0 0
    %507 = vmatpush1.bf16.msra.mxu0 %v479
    %508 = vmatprep.subr.bf16.mxu0 0
    %509 = vmatpush1.bf16.msra.mxu0 %v478
    %510 = vmatprep.subr.bf16.mxu0 0
    %511 = vmatpush2.bf16.msra.mxu0 0
    %512 = vmatprep.subr.bf16.mxu0 0
    %513 = vmatpush2.bf16.msra.mxu0 0
    %514 = vmatprep.subr.bf16.mxu0 0
    %515 = vmatpush2.bf16.msra.mxu0 0
    %516 = vmatprep.subr.bf16.mxu0 0
    %517 = vmatpush2.bf16.msra.mxu0 0
    %518 = vmatprep.subr.bf16.mxu0 0
    %519 = vmatpush2.bf16.msra.mxu0 0
    %520 = vmatprep.subr.bf16.mxu0 0
    %521 = vmatpush2.bf16.msra.mxu0 0
    %522 = vmatprep.subr.bf16.mxu0 0
    %523 = vmatpush2.bf16.msra.mxu0 0
    %524 = vmatprep.subr.bf16.mxu0 0
    %525 = vmatpush2.bf16.msra.mxu0 0
    %526 = vmatprep.mubr.bf16.mxu0 0
    %527 = vmatmul.mubr.bf16.gmra.mxu0 %v422
    %v528 = vpop.f32.mrf.mxu0
    %v529 = vadd.f32 %v444, %v528
    %v530 = vpop.f32.mrf.mxu0
    %v531 = vpop.f32.mrf.mxu0
    %v532 = vpop.f32.mrf.mxu0
    %533 = vdwg.mxu0
    %534 = vst [vmem:[%s9] sm:$0xff] %v529
    // Predicated region
    $region54: #{critic_forward.1} parent=1 // pred_check
      _
    $region55: #{critic_forward.1} parent=1 // pred_check_branch
      %536 = sbr.rel (0) target = $region57
    $region56: #{critic_forward.1} parent=1 // pred_region
      _
    $region57: #{critic_forward.1} parent=1 // pred_fallthru
      _
    // Predicated region
    $region58: #{critic_forward.1} parent=1 // pred_check
      _
    $region59: #{critic_forward.1} parent=1 // pred_check_branch
      %538 = sbr.rel (0) target = $region61
    $region60: #{critic_forward.1} parent=1 // pred_region
      _
    $region61: #{critic_forward.1} parent=1 // pred_fallthru
      _
    %539 = vsyncpa [#allocation3], 1
    %540 = vsyncpa [#allocation5], 1
    %541 = vsyncpa [#allocation8], 1

</llo_original>
